<compile_context>
chip_gen: v7x
topology: tpu7x:2x2x1
jax: 0.10.0
libtpu: 0.0.40
codegen_flags: <defaults>
</compile_context>

<pallas_src>
import math
import functools

import jax
import jax.numpy as jnp
from jax.experimental import pallas as pl
from jax.experimental.pallas import tpu as pltpu


def _round_up(x, m):
    return ((x + m - 1) // m) * m


# ---------------------------------------------------------------------------
# Pallas kernel: whole MLP (4 matmuls + 3 leaky-ReLU) fused in one kernel.
# w_ref holds [W0_pad; W1; W2; W3] stacked along axis 0 (all padded to NPAD
# lanes, W0 padded to KPAD rows), b_ref holds the 4 bias rows (8 x NPAD, f32).
# ---------------------------------------------------------------------------
def _mapping_mlp_kernel(z_ref, w_ref, b_ref, out_ref, *, z_dim, kpad, npad):
    def leaky_relu(x):
        return jnp.where(x > 0, x, 0.2 * x)

    wdt = w_ref.dtype
    x = z_ref[...]                                   # (TB, z_dim), bf16

    w0 = w_ref[0:z_dim, :]                           # only the real K rows
    w1 = w_ref[kpad:kpad + npad, :]
    w2 = w_ref[kpad + npad:kpad + 2 * npad, :]
    w3 = w_ref[kpad + 2 * npad:kpad + 3 * npad, :]

    h = leaky_relu(jnp.dot(x, w0, preferred_element_type=jnp.float32)
                   + b_ref[0:1, :])
    h = leaky_relu(jnp.dot(h.astype(wdt), w1, preferred_element_type=jnp.float32)
                   + b_ref[1:2, :])
    h = leaky_relu(jnp.dot(h.astype(wdt), w2, preferred_element_type=jnp.float32)
                   + b_ref[2:3, :])
    out_ref[...] = (jnp.dot(h.astype(wdt), w3, preferred_element_type=jnp.float32)
                    + b_ref[3:4, :])


# ---------------------------------------------------------------------------
# One-time parameter packing (do NOT call per forward).
# ---------------------------------------------------------------------------
def pack_params(params, *, weight_dtype=jnp.bfloat16):
    (w0, b0), (w1, b1), (w2, b2), (w3, b3) = params
    z_dim, hidden = w0.shape
    out_dim = w3.shape[1]

    KPAD = _round_up(z_dim, 128)                                   # 505 -> 512
    NPAD = max(_round_up(hidden, 128), _round_up(out_dim, 128), 128)

    def pad2(a, rows, cols):
        return jnp.zeros((rows, cols), weight_dtype).at[
            :a.shape[0], :a.shape[1]].set(a.astype(weight_dtype))

    # Zero rows/cols are exact no-ops through the MLP (leaky_relu(0)==0 and
    # zero weight rows kill padded features).
    w_packed = jnp.concatenate(
        [pad2(w0, KPAD, NPAD),
         pad2(w1, NPAD, NPAD),
         pad2(w2, NPAD, NPAD),
         pad2(w3, NPAD, NPAD)], axis=0)                # [KPAD + 3*NPAD, NPAD]

    b_packed = jnp.zeros((8, NPAD), jnp.float32)
    for i, b in enumerate((b0, b1, b2, b3)):
        b_packed = b_packed.at[i, :b.shape[-1]].set(
            b.reshape(-1).astype(jnp.float32))

    return dict(w=w_packed, b=b_packed,
                z_dim=z_dim, kpad=KPAD, npad=NPAD, out_dim=out_dim)


# ---------------------------------------------------------------------------
# Forward wrapper: no padded z copy, no batch padding; batch-parallel grid.
# ---------------------------------------------------------------------------
def mapping_network_forward(z, packed, *, batch_tile=512,
                            compute_dtype=jnp.bfloat16):
    """Equivalent of ControlableMappingNetwork.forward(z) restricted to the
    mapping MLP (pitch/yaw None branch). Returns (frequencies, phase_shifts)."""
    B, z_dim = z.shape
    assert z_dim == packed["z_dim"]
    KPAD, NPAD, out_dim = packed["kpad"], packed["npad"], packed["out_dim"]
    half = out_dim // 2
    w_packed, b_packed = packed["w"], packed["b"]

    # Stream z as bf16 (matmul accumulates in f32).
    z_in = z if z.dtype == compute_dtype else z.astype(compute_dtype)

    # Batch tiling: TB multiple of 8, no batch padding (grid = cdiv(B, TB)).
    B8 = _round_up(B, 8)
    TB = min(_round_up(batch_tile, 8), B8)
    if B8 >= 16:
        # Ensure >= 2 grid steps so the "parallel" axis can span v7x's 2 TCs.
        TB = min(TB, _round_up(pl.cdiv(B8, 2), 8))
    TB = max(TB, 8)
    grid_b = pl.cdiv(B, TB)

    kernel = functools.partial(_mapping_mlp_kernel,
                               z_dim=z_dim, kpad=KPAD, npad=NPAD)

    # VMEM estimate: double-buffered z + out blocks, single-buffered weights.
    vmem_est = (2 * TB * z_dim * z_in.dtype.itemsize
                + 2 * TB * NPAD * 4
                + w_packed.size * w_packed.dtype.itemsize
                + b_packed.size * 4
                + (1 << 20))
    cp_kwargs = dict(dimension_semantics=("parallel",))
    if vmem_est > (16 << 20):        # only needed for very large TB (v5e: 16 MiB default)
        cp_kwargs["vmem_limit_bytes"] = min(int(2 * vmem_est), 64 << 20)

    out = pl.pallas_call(
        kernel,
        out_shape=jax.ShapeDtypeStruct((B, NPAD), jnp.float32),
        grid=(grid_b,),
        in_specs=[
            pl.BlockSpec((TB, z_dim), lambda i: (i, 0)),            # z tile
            pl.BlockSpec((KPAD + 3 * NPAD, NPAD), lambda i: (0, 0), # weights
                         pipeline_mode=pl.Buffered(1)),
            pl.BlockSpec((8, NPAD), lambda i: (0, 0),               # biases
                         pipeline_mode=pl.Buffered(1)),
        ],
        out_specs=pl.BlockSpec((TB, NPAD), lambda i: (i, 0)),
        compiler_params=pltpu.CompilerParams(**cp_kwargs),
    )(z_in, w_packed, b_packed)

    # De-pad lanes and split freq/phase outside the kernel.
    out = out[:, :out_dim]
    return out[:, :half], out[:, half:]


# ---------------------------------------------------------------------------
# Deterministic parameter initialization (mirrors the module's __init__):
#   - kaiming_normal_(a=0.2, mode='fan_in', nonlinearity='leaky_relu'),
#   - default uniform(-1/sqrt(fan_in), 1/sqrt(fan_in)) bias init,
#   - last layer weight scaled by 0.25.
# Weights returned transposed to [in_dim, out_dim] for the kernel layout.
# ---------------------------------------------------------------------------
def init_params(key, z_dim, hidden_dim, out_dim):
    dims = [(z_dim, hidden_dim),
            (hidden_dim, hidden_dim),
            (hidden_dim, hidden_dim),
            (hidden_dim, out_dim)]
    params = []
    a = 0.2
    gain = math.sqrt(2.0 / (1.0 + a * a))  # leaky_relu gain
    for li, (fan_in, fan_out) in enumerate(dims):
        key, kw, kb = jax.random.split(key, 3)
        std = gain / math.sqrt(fan_in)
        w = std * jax.random.normal(kw, (fan_in, fan_out), dtype=jnp.float32)
        bound = 1.0 / math.sqrt(fan_in)
        b = jax.random.uniform(kb, (1, fan_out), dtype=jnp.float32,
                               minval=-bound, maxval=bound)
        if li == len(dims) - 1:
            w = w * 0.25
        params.append((w, b))
    return params


# ---------------------------------------------------------------------------
# Pure-JAX (float32) reference for a correctness check.
# ---------------------------------------------------------------------------
def reference_forward(z, params):
    h = z
    for i, (w, b) in enumerate(params):
        h = h @ w + b
        if i < len(params) - 1:
            h = jnp.where(h > 0, h, 0.2 * h)
    half = h.shape[-1] // 2
    return h[:, :half], h[:, half:]


if __name__ == "__main__":
    # z_dim is fixed by the module's assertion: 256 + 199 + 50 = 505.
    Z_DIM = 256 + 199 + 50
    HIDDEN = 32          # map_hidden_dim (small)
    OUT = 16             # map_output_dim (even, so freq/phase split works)
    BATCH = 2

    key = jax.random.PRNGKey(0)
    key, kz = jax.random.split(key)
    z = jax.random.normal(kz, (BATCH, Z_DIM), dtype=jnp.float32)

    params = init_params(key, Z_DIM, HIDDEN, OUT)
    packed = pack_params(params)                 # packed ONCE, reused per call

    freq, phase = mapping_network_forward(z, packed)
    freq = jax.block_until_ready(freq)
    phase = jax.block_until_ready(phase)

    ref_freq, ref_phase = reference_forward(z, params)
    assert freq.shape == (BATCH, OUT // 2) and phase.shape == (BATCH, OUT // 2)
    # bf16 operand streaming -> relaxed tolerance vs the f32 reference.
    assert jnp.allclose(freq, ref_freq, atol=5e-2, rtol=5e-2)
    assert jnp.allclose(phase, ref_phase, atol=5e-2, rtol=5e-2)

    print("KERNEL_OK")
</pallas_src>

<mosaic_0001>
module attributes {stable_mosaic.version = 11 : i64} {
  func.func @_mapping_mlp_kernel(%arg0: i32, %arg1: memref<8x505xbf16, #tpu.memory_space<vmem>>, %arg2: memref<896x128xbf16, #tpu.memory_space<vmem>>, %arg3: memref<8x128xf32, #tpu.memory_space<vmem>>, %arg4: memref<8x128xf32, #tpu.memory_space<vmem>>) attributes {dimension_semantics = [#tpu.dimension_semantics<parallel>], iteration_bounds = array<i64: 1>, scalar_prefetch = 0 : i64, scratch_operands = 0 : i64, tpu.core_type = #tpu.core_type<tc>, window_params = [{transform_indices = @transform_0, window_bounds = array<i64: 8, 505>}, {pipeline_mode = #tpu.pipeline_mode<synchronous>, transform_indices = @transform_1, window_bounds = array<i64: 896, 128>}, {pipeline_mode = #tpu.pipeline_mode<synchronous>, transform_indices = @transform_2, window_bounds = array<i64: 8, 128>}, {transform_indices = @transform_3, window_bounds = array<i64: 8, 128>}]} {
    %c0 = arith.constant 0 : index
    %c0_0 = arith.constant 0 : index
    %0 = vector.load %arg1[%c0, %c0_0] : memref<8x505xbf16, #tpu.memory_space<vmem>>, vector<8x505xbf16>
    %c0_1 = arith.constant 0 : index
    %c0_2 = arith.constant 0 : index
    %1 = vector.load %arg2[%c0_1, %c0_2] : memref<896x128xbf16, #tpu.memory_space<vmem>>, vector<505x128xbf16>
    %c512 = arith.constant 512 : index
    %c0_3 = arith.constant 0 : index
    %2 = vector.load %arg2[%c512, %c0_3] : memref<896x128xbf16, #tpu.memory_space<vmem>>, vector<128x128xbf16>
    %c640 = arith.constant 640 : index
    %c0_4 = arith.constant 0 : index
    %3 = vector.load %arg2[%c640, %c0_4] : memref<896x128xbf16, #tpu.memory_space<vmem>>, vector<128x128xbf16>
    %c768 = arith.constant 768 : index
    %c0_5 = arith.constant 0 : index
    %4 = vector.load %arg2[%c768, %c0_5] : memref<896x128xbf16, #tpu.memory_space<vmem>>, vector<128x128xbf16>
    %cst = arith.constant dense<0.000000e+00> : vector<8x128xf32>
    %5 = tpu.matmul %0, %1, %cst {dimension_numbers = #tpu.dot_dimension_numbers<[1], [0], [0], [1], [0, 0, 1, 1], [], []>} : vector<8x505xbf16>, vector<505x128xbf16>, vector<8x128xf32> -> vector<8x128xf32>
    %c0_6 = arith.constant 0 : index
    %c0_7 = arith.constant 0 : index
    %6 = vector.load %arg3[%c0_6, %c0_7] : memref<8x128xf32, #tpu.memory_space<vmem>>, vector<1x128xf32>
    %7 = vector.broadcast %6 : vector<1x128xf32> to vector<8x128xf32>
    %8 = arith.addf %5, %7 : vector<8x128xf32>
    %cst_8 = arith.constant 0.000000e+00 : f32
    %9 = vector.broadcast %cst_8 : f32 to vector<8x128xf32>
    %10 = arith.cmpf ogt, %8, %9 : vector<8x128xf32>
    %cst_9 = arith.constant 2.000000e-01 : f32
    %11 = vector.broadcast %cst_9 : f32 to vector<8x128xf32>
    %12 = arith.mulf %11, %8 : vector<8x128xf32>
    %13 = arith.select %10, %8, %12 : vector<8x128xi1>, vector<8x128xf32>
    %14 = arith.truncf %13 : vector<8x128xf32> to vector<8x128xbf16>
    %cst_10 = arith.constant dense<0.000000e+00> : vector<8x128xf32>
    %15 = tpu.matmul %14, %2, %cst_10 {dimension_numbers = #tpu.dot_dimension_numbers<[1], [0], [0], [1], [0, 0, 1, 1], [], []>} : vector<8x128xbf16>, vector<128x128xbf16>, vector<8x128xf32> -> vector<8x128xf32>
    %c1 = arith.constant 1 : index
    %c0_11 = arith.constant 0 : index
    %16 = vector.load %arg3[%c1, %c0_11] : memref<8x128xf32, #tpu.memory_space<vmem>>, vector<1x128xf32>
    %17 = vector.broadcast %16 : vector<1x128xf32> to vector<8x128xf32>
    %18 = arith.addf %15, %17 : vector<8x128xf32>
    %cst_12 = arith.constant 0.000000e+00 : f32
    %19 = vector.broadcast %cst_12 : f32 to vector<8x128xf32>
    %20 = arith.cmpf ogt, %18, %19 : vector<8x128xf32>
    %cst_13 = arith.constant 2.000000e-01 : f32
    %21 = vector.broadcast %cst_13 : f32 to vector<8x128xf32>
    %22 = arith.mulf %21, %18 : vector<8x128xf32>
    %23 = arith.select %20, %18, %22 : vector<8x128xi1>, vector<8x128xf32>
    %24 = arith.truncf %23 : vector<8x128xf32> to vector<8x128xbf16>
    %cst_14 = arith.constant dense<0.000000e+00> : vector<8x128xf32>
    %25 = tpu.matmul %24, %3, %cst_14 {dimension_numbers = #tpu.dot_dimension_numbers<[1], [0], [0], [1], [0, 0, 1, 1], [], []>} : vector<8x128xbf16>, vector<128x128xbf16>, vector<8x128xf32> -> vector<8x128xf32>
    %c2 = arith.constant 2 : index
    %c0_15 = arith.constant 0 : index
    %26 = vector.load %arg3[%c2, %c0_15] : memref<8x128xf32, #tpu.memory_space<vmem>>, vector<1x128xf32>
    %27 = vector.broadcast %26 : vector<1x128xf32> to vector<8x128xf32>
    %28 = arith.addf %25, %27 : vector<8x128xf32>
    %cst_16 = arith.constant 0.000000e+00 : f32
    %29 = vector.broadcast %cst_16 : f32 to vector<8x128xf32>
    %30 = arith.cmpf ogt, %28, %29 : vector<8x128xf32>
    %cst_17 = arith.constant 2.000000e-01 : f32
    %31 = vector.broadcast %cst_17 : f32 to vector<8x128xf32>
    %32 = arith.mulf %31, %28 : vector<8x128xf32>
    %33 = arith.select %30, %28, %32 : vector<8x128xi1>, vector<8x128xf32>
    %34 = arith.truncf %33 : vector<8x128xf32> to vector<8x128xbf16>
    %cst_18 = arith.constant dense<0.000000e+00> : vector<8x128xf32>
    %35 = tpu.matmul %34, %4, %cst_18 {dimension_numbers = #tpu.dot_dimension_numbers<[1], [0], [0], [1], [0, 0, 1, 1], [], []>} : vector<8x128xbf16>, vector<128x128xbf16>, vector<8x128xf32> -> vector<8x128xf32>
    %c3 = arith.constant 3 : index
    %c0_19 = arith.constant 0 : index
    %36 = vector.load %arg3[%c3, %c0_19] : memref<8x128xf32, #tpu.memory_space<vmem>>, vector<1x128xf32>
    %37 = vector.broadcast %36 : vector<1x128xf32> to vector<8x128xf32>
    %38 = arith.addf %35, %37 : vector<8x128xf32>
    %c0_20 = arith.constant 0 : index
    %c0_21 = arith.constant 0 : index
    %39 = vector.load %arg4[%c0_20, %c0_21] : memref<8x128xf32, #tpu.memory_space<vmem>>, vector<8x128xf32>
    tpu.vector_store %arg4[%c0_20, %c0_21], %38 {strides = array<i32>} : memref<8x128xf32, #tpu.memory_space<vmem>>, vector<8x128xf32>,
    return
  }
  func.func @transform_0(%arg0: i32) -> (i32, i32) {
    %c0_i32 = arith.constant 0 : i32
    %c0_i32_0 = arith.constant 0 : i32
    return %arg0, %c0_i32 : i32, i32
  }
  func.func @transform_1(%arg0: i32) -> (i32, i32) {
    %c0_i32 = arith.constant 0 : i32
    %c0_i32_0 = arith.constant 0 : i32
    %c0_i32_1 = arith.constant 0 : i32
    return %c0_i32, %c0_i32_0 : i32, i32
  }
  func.func @transform_2(%arg0: i32) -> (i32, i32) {
    %c0_i32 = arith.constant 0 : i32
    %c0_i32_0 = arith.constant 0 : i32
    %c0_i32_1 = arith.constant 0 : i32
    return %c0_i32, %c0_i32_0 : i32, i32
  }
  func.func @transform_3(%arg0: i32) -> (i32, i32) {
    %c0_i32 = arith.constant 0 : i32
    %c0_i32_0 = arith.constant 0 : i32
    return %arg0, %c0_i32 : i32, i32
  }
}

</mosaic_0001>

<llo_original>
// kernel: tpu_custom_call.1
$region0: #{tpu_custom_call.1}
  #allocation0 [shape = 'u32[]', space=smem, size = 0x4, offset = 0x4, fixed_abs, tag = 'smem constant byte address 0x4 - core index']
  #allocation1 [shape = 'u32[144,128]{1,0:T(1,128)}', space=vmem, size = 0x12000, scoped, tag = 'internal scratch']
  %s0 = inlined_call_operand.hbm [shape: bf16[2,505], index: 0, kind: input, shape index: {}]
  %s1 = inlined_call_operand.hbm [shape: bf16[896,128], index: 1, kind: input, shape index: {}]
  %s2 = inlined_call_operand.hbm [shape: f32[8,128], index: 2, kind: input, shape index: {}]
  %s3 = inlined_call_operand.hbm [shape: f32[2,128], index: 3, kind: output, shape index: {}]
  %s4 = sld [smem:[#allocation0]]
  $region34: #{tpu_custom_call.1} parent=0
    _
  %s6 = ssub.s32 1, %s4
  %s7 = scalar_select 0, %s6, %s4
  $region1: #{tpu_custom_call.1} parent=0
    #allocation2 [shape = 'u8[8192]{0}', space=vmem, size = 0x2000, scoped, tag = 'input window, operand 0, single buffered']
    #allocation3 [shape = 's32[1]{0}', space=sflag, size = 0x4, scoped, tag = 'scoped memory for tpu_custom_call.1']
    #allocation4 [shape = 's32[1]{0}', space=sflag, size = 0x4, scoped, tag = 'scoped memory for tpu_custom_call.1']
    #allocation5 [shape = 'u8[229376]{0}', space=vmem, size = 0x38000, scoped, tag = 'input window, operand 1, single buffered']
    #allocation6 [shape = 's32[1]{0}', space=sflag, size = 0x4, scoped, tag = 'scoped memory for tpu_custom_call.1']
    #allocation7 [shape = 'u8[4096]{0}', space=vmem, size = 0x1000, scoped, tag = 'input window, operand 2, single buffered']
    #allocation8 [shape = 'u8[4096]{0}', space=vmem, size = 0x1000, scoped, tag = 'output window, operand 0, single buffered']
    %8 = vsyncpa [#allocation3], 0
    %9 = vsyncpa [#allocation6], 0
    %10 = vsyncpa [#allocation4], 0
    // Predicated region
    $region2: #{tpu_custom_call.1} parent=1 // pred_check
      _
    $region3: #{tpu_custom_call.1} parent=1 // pred_check_branch
      %12 = sbr.rel (0) target = $region5
    $region4: #{tpu_custom_call.1} parent=1 // pred_region
      %s14 = ssub.s32 256, 64
      %15 = vsyncadd [#allocation3], %s14
      %s16 = sshll.u32 [#allocation2], 4
      %s17 = int_to_ptr.vmem [resolvable:$true] %s16
      %22 = dma.hbm_to_vmem [thread:$0]  %s0, 64, %s17, [#allocation3], 64, 64, 4
    $region5: #{tpu_custom_call.1} parent=1 // pred_fallthru
      _
    // Predicated region
    $region6: #{tpu_custom_call.1} parent=1 // pred_check
      _
    $region7: #{tpu_custom_call.1} parent=1 // pred_check_branch
      %24 = sbr.rel (0) target = $region9
    $region8: #{tpu_custom_call.1} parent=1 // pred_region
      %s26 = ssub.s32 7168, 7168
      %27 = vsyncadd [#allocation6], %s26
      %s28 = sshll.u32 [#allocation5], 4
      %s29 = int_to_ptr.vmem [resolvable:$true] %s28
      %34 = dma.hbm_to_vmem [thread:$0]  %s1, 7168, %s29, [#allocation6], 64, 64, 4
    $region9: #{tpu_custom_call.1} parent=1 // pred_fallthru
      _
    // Predicated region
    $region10: #{tpu_custom_call.1} parent=1 // pred_check
      _
    $region11: #{tpu_custom_call.1} parent=1 // pred_check_branch
      %36 = sbr.rel (0) target = $region13
    $region12: #{tpu_custom_call.1} parent=1 // pred_region
      %s38 = ssub.s32 128, 128
      %39 = vsyncadd [#allocation6], %s38
      %s41 = sshll.u32 [#allocation7], 4
      %s42 = int_to_ptr.vmem [resolvable:$true] %s41
      %44 = dma.hbm_to_vmem [thread:$0]  %s2, 128, %s42, [#allocation6]
    $region13: #{tpu_custom_call.1} parent=1 // pred_fallthru
      _
    // Predicated region
    $region14: #{tpu_custom_call.1} parent=1 // pred_check
      _
    $region15: #{tpu_custom_call.1} parent=1 // pred_check_branch
      %46 = sbr.rel (0) target = $region17
    $region16: #{tpu_custom_call.1} parent=1 // pred_region
      %47 = dma.done [#allocation3], 256
    $region17: #{tpu_custom_call.1} parent=1 // pred_fallthru
      _
    // Predicated region
    $region18: #{tpu_custom_call.1} parent=1 // pred_check
      _
    $region19: #{tpu_custom_call.1} parent=1 // pred_check_branch
      %49 = sbr.rel (0) target = $region21
    $region20: #{tpu_custom_call.1} parent=1 // pred_region
      %50 = dma.done [#allocation6], 7168
    $region21: #{tpu_custom_call.1} parent=1 // pred_fallthru
      _
    // Predicated region
    $region22: #{tpu_custom_call.1} parent=1 // pred_check
      _
    $region23: #{tpu_custom_call.1} parent=1 // pred_check_branch
      %52 = sbr.rel (0) target = $region25
    $region24: #{tpu_custom_call.1} parent=1 // pred_region
      %53 = dma.done [#allocation6], 128
    $region25: #{tpu_custom_call.1} parent=1 // pred_fallthru
      _
    %v55 = vld [vmem:[#allocation2] sm:$0xf]
    %v56 = vld [vmem:[#allocation2 + $0x4] sm:$0xf]
    %v57 = vld [vmem:[#allocation2 + $0x8] sm:$0xf]
    %v58 = vld [vmem:[#allocation2 + $0xc] sm:$0xf]
    %v59 = vld [vmem:[#allocation5] sm:$0xf]
    %v60 = vld [vmem:[#allocation5 + $0x4] sm:$0xf]
    %v61 = vld [vmem:[#allocation5 + $0x8] sm:$0xf]
    %v62 = vld [vmem:[#allocation5 + $0xc] sm:$0xf]
    %v63 = vld [vmem:[#allocation5 + $0x10] sm:$0xf]
    %v64 = vld [vmem:[#allocation5 + $0x14] sm:$0xf]
    %v65 = vld [vmem:[#allocation5 + $0x18] sm:$0xf]
    %v66 = vld [vmem:[#allocation5 + $0x1c] sm:$0xf]
    %v67 = vld [vmem:[#allocation5 + $0x20] sm:$0xf]
    %v68 = vld [vmem:[#allocation5 + $0x24] sm:$0xf]
    %v69 = vld [vmem:[#allocation5 + $0x28] sm:$0xf]
    %v70 = vld [vmem:[#allocation5 + $0x2c] sm:$0xf]
    %v71 = vld [vmem:[#allocation5 + $0x30] sm:$0xf]
    %v72 = vld [vmem:[#allocation5 + $0x34] sm:$0xf]
    %v73 = vld [vmem:[#allocation5 + $0x38] sm:$0xf]
    %v74 = vld [vmem:[#allocation5 + $0x3c] sm:$0xf]
    %v75 = vld [vmem:[#allocation5 + $0x40] sm:$0xf]
    %v76 = vld [vmem:[#allocation5 + $0x44] sm:$0xf]
    %v77 = vld [vmem:[#allocation5 + $0x48] sm:$0xf]
    %v78 = vld [vmem:[#allocation5 + $0x4c] sm:$0xf]
    %v79 = vld [vmem:[#allocation5 + $0x50] sm:$0xf]
    %v80 = vld [vmem:[#allocation5 + $0x54] sm:$0xf]
    %v81 = vld [vmem:[#allocation5 + $0x58] sm:$0xf]
    %v82 = vld [vmem:[#allocation5 + $0x5c] sm:$0xf]
    %v83 = vld [vmem:[#allocation5 + $0x60] sm:$0xf]
    %v84 = vld [vmem:[#allocation5 + $0x64] sm:$0xf]
    %v85 = vld [vmem:[#allocation5 + $0x68] sm:$0xf]
    %v86 = vld [vmem:[#allocation5 + $0x6c] sm:$0xf]
    %v87 = vld [vmem:[#allocation5 + $0x70] sm:$0xf]
    %v88 = vld [vmem:[#allocation5 + $0x74] sm:$0xf]
    %v89 = vld [vmem:[#allocation5 + $0x78] sm:$0xf]
    %v90 = vld [vmem:[#allocation5 + $0x7c] sm:$0xf]
    %v91 = vld [vmem:[#allocation5 + $0x80] sm:$0xf]
    %v92 = vld [vmem:[#allocation5 + $0x84] sm:$0xf]
    %v93 = vld [vmem:[#allocation5 + $0x88] sm:$0xf]
    %v94 = vld [vmem:[#allocation5 + $0x8c] sm:$0xf]
    %v95 = vld [vmem:[#allocation5 + $0x90] sm:$0xf]
    %v96 = vld [vmem:[#allocation5 + $0x94] sm:$0xf]
    %v97 = vld [vmem:[#allocation5 + $0x98] sm:$0xf]
    %v98 = vld [vmem:[#allocation5 + $0x9c] sm:$0xf]
    %v99 = vld [vmem:[#allocation5 + $0xa0] sm:$0xf]
    %v100 = vld [vmem:[#allocation5 + $0xa4] sm:$0xf]
    %v101 = vld [vmem:[#allocation5 + $0xa8] sm:$0xf]
    %v102 = vld [vmem:[#allocation5 + $0xac] sm:$0xf]
    %v103 = vld [vmem:[#allocation5 + $0xb0] sm:$0xf]
    %v104 = vld [vmem:[#allocation5 + $0xb4] sm:$0xf]
    %v105 = vld [vmem:[#allocation5 + $0xb8] sm:$0xf]
    %v106 = vld [vmem:[#allocation5 + $0xbc] sm:$0xf]
    %v107 = vld [vmem:[#allocation5 + $0xc0] sm:$0xf]
    %v108 = vld [vmem:[#allocation5 + $0xc4] sm:$0xf]
    %v109 = vld [vmem:[#allocation5 + $0xc8] sm:$0xf]
    %v110 = vld [vmem:[#allocation5 + $0xcc] sm:$0xf]
    %v111 = vld [vmem:[#allocation5 + $0xd0] sm:$0xf]
    %v112 = vld [vmem:[#allocation5 + $0xd4] sm:$0xf]
    %v113 = vld [vmem:[#allocation5 + $0xd8] sm:$0xf]
    %v114 = vld [vmem:[#allocation5 + $0xdc] sm:$0xf]
    %v115 = vld [vmem:[#allocation5 + $0xe0] sm:$0xf]
    %v116 = vld [vmem:[#allocation5 + $0xe4] sm:$0xf]
    %v117 = vld [vmem:[#allocation5 + $0xe8] sm:$0xf]
    %v118 = vld [vmem:[#allocation5 + $0xec] sm:$0xf]
    %v119 = vld [vmem:[#allocation5 + $0xf0] sm:$0xf]
    %v120 = vld [vmem:[#allocation5 + $0xf4] sm:$0xf]
    %v121 = vld [vmem:[#allocation5 + $0xf8] sm:$0xf]
    %v122 = vld [vmem:[#allocation5 + $0xfc] sm:$0x1]
    %v123 = vld [vmem:[#allocation5 + $0x100] sm:$0xf]
    %v124 = vld [vmem:[#allocation5 + $0x104] sm:$0xf]
    %v125 = vld [vmem:[#allocation5 + $0x108] sm:$0xf]
    %v126 = vld [vmem:[#allocation5 + $0x10c] sm:$0xf]
    %v127 = vld [vmem:[#allocation5 + $0x110] sm:$0xf]
    %v128 = vld [vmem:[#allocation5 + $0x114] sm:$0xf]
    %v129 = vld [vmem:[#allocation5 + $0x118] sm:$0xf]
    %v130 = vld [vmem:[#allocation5 + $0x11c] sm:$0xf]
    %v131 = vld [vmem:[#allocation5 + $0x120] sm:$0xf]
    %v132 = vld [vmem:[#allocation5 + $0x124] sm:$0xf]
    %v133 = vld [vmem:[#allocation5 + $0x128] sm:$0xf]
    %v134 = vld [vmem:[#allocation5 + $0x12c] sm:$0xf]
    %v135 = vld [vmem:[#allocation5 + $0x130] sm:$0xf]
    %v136 = vld [vmem:[#allocation5 + $0x134] sm:$0xf]
    %v137 = vld [vmem:[#allocation5 + $0x138] sm:$0xf]
    %v138 = vld [vmem:[#allocation5 + $0x13c] sm:$0xf]
    %v139 = vld [vmem:[#allocation5 + $0x140] sm:$0xf]
    %v140 = vld [vmem:[#allocation5 + $0x144] sm:$0xf]
    %v141 = vld [vmem:[#allocation5 + $0x148] sm:$0xf]
    %v142 = vld [vmem:[#allocation5 + $0x14c] sm:$0xf]
    %v143 = vld [vmem:[#allocation5 + $0x150] sm:$0xf]
    %v144 = vld [vmem:[#allocation5 + $0x154] sm:$0xf]
    %v145 = vld [vmem:[#allocation5 + $0x158] sm:$0xf]
    %v146 = vld [vmem:[#allocation5 + $0x15c] sm:$0xf]
    %v147 = vld [vmem:[#allocation5 + $0x160] sm:$0xf]
    %v148 = vld [vmem:[#allocation5 + $0x164] sm:$0xf]
    %v149 = vld [vmem:[#allocation5 + $0x168] sm:$0xf]
    %v150 = vld [vmem:[#allocation5 + $0x16c] sm:$0xf]
    %v151 = vld [vmem:[#allocation5 + $0x170] sm:$0xf]
    %v152 = vld [vmem:[#allocation5 + $0x174] sm:$0xf]
    %v153 = vld [vmem:[#allocation5 + $0x178] sm:$0xf]
    %v154 = vld [vmem:[#allocation5 + $0x17c] sm:$0xf]
    %v155 = vld [vmem:[#allocation5 + $0x180] sm:$0xf]
    %v156 = vld [vmem:[#allocation5 + $0x184] sm:$0xf]
    %v157 = vld [vmem:[#allocation5 + $0x188] sm:$0xf]
    %v158 = vld [vmem:[#allocation5 + $0x18c] sm:$0xf]
    %v159 = vld [vmem:[#allocation5 + $0x190] sm:$0xf]
    %v160 = vld [vmem:[#allocation5 + $0x194] sm:$0xf]
    %v161 = vld [vmem:[#allocation5 + $0x198] sm:$0xf]
    %v162 = vld [vmem:[#allocation5 + $0x19c] sm:$0xf]
    %v163 = vld [vmem:[#allocation5 + $0x1a0] sm:$0xf]
    %v164 = vld [vmem:[#allocation5 + $0x1a4] sm:$0xf]
    %v165 = vld [vmem:[#allocation5 + $0x1a8] sm:$0xf]
    %v166 = vld [vmem:[#allocation5 + $0x1ac] sm:$0xf]
    %v167 = vld [vmem:[#allocation5 + $0x1b0] sm:$0xf]
    %v168 = vld [vmem:[#allocation5 + $0x1b4] sm:$0xf]
    %v169 = vld [vmem:[#allocation5 + $0x1b8] sm:$0xf]
    %v170 = vld [vmem:[#allocation5 + $0x1bc] sm:$0xf]
    %v171 = vld [vmem:[#allocation7] sm:$0x1]
    %v172 = vlaneseq
    %v173 = vshrl.u32 %v172, 7
    %v174 = vsub.s32 0, %v173
    %v175 = vrot.slane %v171, %v174
    %v180 = vcombine.low %v55, %v56
    %v181 = vcombine.low %v57, %v58
    %v183 = vunpack.c.l.s4 1966171168
    %v184 = vunpack.c.0.s8 %v183
    %v185 = vlaneseq
    %v186 = vshrl.u32 %v185, 7
    %v187 = vsub.s32 %v184, %v186
    %v188 = vrot.slane %v180, %v187
    %v190 = vunpack.c.l.s4 1966171168
    %v191 = vunpack.c.0.s8 %v190
    %v192 = vlaneseq
    %v193 = vshrl.u32 %v192, 7
    %v194 = vsub.s32 %v191, %v193
    %v195 = vrot.slane %v181, %v194
    %v196 = vcombine.low %v188, %v195
    %v197 = vcombine.high %v188, %v195
    %v199 = vunpack.c.l.s4 1966171168
    %v200 = vunpack.c.0.s8 %v199
    %v201 = vlaneseq
    %v202 = vshrl.u32 %v201, 7
    %v203 = vsub.s32 %v200, %v202
    %v204 = vrot.slane %v196, %v203
    %v206 = vunpack.c.l.s4 1966171168
    %v207 = vunpack.c.0.s8 %v206
    %v208 = vlaneseq
    %v209 = vshrl.u32 %v208, 7
    %v210 = vsub.s32 %v207, %v209
    %v211 = vrot.slane %v197, %v210
    %v212 = vcombine.high %v204, %v204
    %v213 = vcombine.high %v211, %v211
    %v281 = vunpack.c.l.b16 %v59
    %v282 = vunpack.c.l.b16 %v60
    %v283 = vunpack.c.l.b16 %v61
    %v284 = vunpack.c.l.b16 %v62
    %v285 = vunpack.c.l.b16 %v63
    %v286 = vunpack.c.l.b16 %v64
    %v287 = vunpack.c.l.b16 %v65
    %v288 = vunpack.c.l.b16 %v66
    %v289 = vunpack.c.l.b16 %v67
    %v290 = vunpack.c.l.b16 %v68
    %v291 = vunpack.c.l.b16 %v69
    %v292 = vunpack.c.l.b16 %v70
    %v293 = vunpack.c.l.b16 %v71
    %v294 = vunpack.c.l.b16 %v72
    %v295 = vunpack.c.l.b16 %v73
    %v296 = vunpack.c.l.b16 %v74
    %v297 = vunpack.c.l.b16 %v75
    %v298 = vunpack.c.l.b16 %v76
    %v299 = vunpack.c.l.b16 %v77
    %v300 = vunpack.c.l.b16 %v78
    %v301 = vunpack.c.l.b16 %v79
    %v302 = vunpack.c.l.b16 %v80
    %v303 = vunpack.c.l.b16 %v81
    %v304 = vunpack.c.l.b16 %v82
    %v305 = vunpack.c.l.b16 %v83
    %v306 = vunpack.c.l.b16 %v84
    %v307 = vunpack.c.l.b16 %v85
    %v308 = vunpack.c.l.b16 %v86
    %v309 = vunpack.c.l.b16 %v87
    %v310 = vunpack.c.l.b16 %v88
    %v311 = vunpack.c.l.b16 %v89
    %v312 = vunpack.c.l.b16 %v90
    %v313 = vunpack.c.l.b16 %v91
    %v314 = vunpack.c.l.b16 %v92
    %v315 = vunpack.c.l.b16 %v93
    %v316 = vunpack.c.l.b16 %v94
    %v317 = vunpack.c.l.b16 %v95
    %v318 = vunpack.c.l.b16 %v96
    %v319 = vunpack.c.l.b16 %v97
    %v320 = vunpack.c.l.b16 %v98
    %v321 = vunpack.c.l.b16 %v99
    %v322 = vunpack.c.l.b16 %v100
    %v323 = vunpack.c.l.b16 %v101
    %v324 = vunpack.c.l.b16 %v102
    %v325 = vunpack.c.l.b16 %v103
    %v326 = vunpack.c.l.b16 %v104
    %v327 = vunpack.c.l.b16 %v105
    %v328 = vunpack.c.l.b16 %v106
    %v329 = vunpack.c.l.b16 %v107
    %v330 = vunpack.c.l.b16 %v108
    %v331 = vunpack.c.l.b16 %v109
    %v332 = vunpack.c.l.b16 %v110
    %v333 = vunpack.c.l.b16 %v111
    %v334 = vunpack.c.l.b16 %v112
    %v335 = vunpack.c.l.b16 %v113
    %v336 = vunpack.c.l.b16 %v114
    %v337 = vunpack.c.l.b16 %v115
    %v338 = vunpack.c.l.b16 %v116
    %v339 = vunpack.c.l.b16 %v117
    %v340 = vunpack.c.l.b16 %v118
    %v341 = vunpack.c.l.b16 %v119
    %v342 = vunpack.c.l.b16 %v120
    %v343 = vunpack.c.l.b16 %v121
    %v344 = vunpack.c.l.b16 %v122
    %v345 = vpack.c.b16 %v282, %v281
    %v346 = vpack.c.b16 %v284, %v283
    %v347 = vpack.c.b16 %v286, %v285
    %v348 = vpack.c.b16 %v288, %v287
    %v349 = vpack.c.b16 %v290, %v289
    %v350 = vpack.c.b16 %v292, %v291
    %v351 = vpack.c.b16 %v294, %v293
    %v352 = vpack.c.b16 %v296, %v295
    %v353 = vpack.c.b16 %v298, %v297
    %v354 = vpack.c.b16 %v300, %v299
    %v355 = vpack.c.b16 %v302, %v301
    %v356 = vpack.c.b16 %v304, %v303
    %v357 = vpack.c.b16 %v306, %v305
    %v358 = vpack.c.b16 %v308, %v307
    %v359 = vpack.c.b16 %v310, %v309
    %v360 = vpack.c.b16 %v312, %v311
    %v361 = vpack.c.b16 %v314, %v313
    %v362 = vpack.c.b16 %v316, %v315
    %v363 = vpack.c.b16 %v318, %v317
    %v364 = vpack.c.b16 %v320, %v319
    %v365 = vpack.c.b16 %v322, %v321
    %v366 = vpack.c.b16 %v324, %v323
    %v367 = vpack.c.b16 %v326, %v325
    %v368 = vpack.c.b16 %v328, %v327
    %v369 = vpack.c.b16 %v330, %v329
    %v370 = vpack.c.b16 %v332, %v331
    %v371 = vpack.c.b16 %v334, %v333
    %v372 = vpack.c.b16 %v336, %v335
    %v373 = vpack.c.b16 %v338, %v337
    %v374 = vpack.c.b16 %v340, %v339
    %v375 = vpack.c.b16 %v342, %v341
    %v376 = vpack.c.b16 %v344, %v343
    %vm408 = vcmask 990208
    %v410 = vsel %vm408, %v213, 0
    %vm412 = vcmask 1043456
    %vm413 = vcmask 1044480
    %v414 = vsel %vm412, 4294967295, 65535
    %v415 = vsel %vm413, %v414, 0
    %v417 = vand.u32 %v376, %v415
    %419 = vmatprep.subr.bf16.mxu0 0
    %420 = vmatpush1.bf16.msra.mxu0 %v345
    %421 = vmatprep.subr.bf16.mxu0 0
    %422 = vmatpush1.bf16.msra.mxu0 %v346
    %423 = vmatprep.subr.bf16.mxu0 0
    %424 = vmatpush1.bf16.msra.mxu0 %v347
    %425 = vmatprep.subr.bf16.mxu0 0
    %426 = vmatpush1.bf16.msra.mxu0 %v348
    %427 = vmatprep.subr.bf16.mxu0 0
    %428 = vmatpush1.bf16.msra.mxu0 %v349
    %429 = vmatprep.subr.bf16.mxu0 0
    %430 = vmatpush1.bf16.msra.mxu0 %v350
    %431 = vmatprep.subr.bf16.mxu0 0
    %432 = vmatpush1.bf16.msra.mxu0 %v351
    %433 = vmatprep.subr.bf16.mxu0 0
    %434 = vmatpush1.bf16.msra.mxu0 %v352
    %435 = vmatprep.subr.bf16.mxu0 0
    %436 = vmatpush1.bf16.msra.mxu0 %v353
    %437 = vmatprep.subr.bf16.mxu0 0
    %438 = vmatpush1.bf16.msra.mxu0 %v354
    %439 = vmatprep.subr.bf16.mxu0 0
    %440 = vmatpush1.bf16.msra.mxu0 %v355
    %441 = vmatprep.subr.bf16.mxu0 0
    %442 = vmatpush1.bf16.msra.mxu0 %v356
    %443 = vmatprep.subr.bf16.mxu0 0
    %444 = vmatpush1.bf16.msra.mxu0 %v357
    %445 = vmatprep.subr.bf16.mxu0 0
    %446 = vmatpush1.bf16.msra.mxu0 %v358
    %447 = vmatprep.subr.bf16.mxu0 0
    %448 = vmatpush1.bf16.msra.mxu0 %v359
    %449 = vmatprep.subr.bf16.mxu0 0
    %450 = vmatpush1.bf16.msra.mxu0 %v360
    %451 = vmatprep.mubr.bf16.mxu0 %v211
    %452 = vmatmul.mubr.bf16.gmra.mrb[0].mxu0 %v204
    %v453 = vpop.f32.mrb[0].mxu0
    %v454 = vadd.f32 %v175, %v453
    %v455 = vpop.f32.mrb[0].mxu0
    %v456 = vpop.f32.mrb[0].mxu0
    %v457 = vpop.f32.mrb[0].mxu0
    %458 = vdwg.mxu0
    %459 = vmatprep.subr.bf16.mxu0 0
    %460 = vmatpush1.bf16.msra.mxu0 %v361
    %461 = vmatprep.subr.bf16.mxu0 0
    %462 = vmatpush1.bf16.msra.mxu0 %v362
    %463 = vmatprep.subr.bf16.mxu0 0
    %464 = vmatpush1.bf16.msra.mxu0 %v363
    %465 = vmatprep.subr.bf16.mxu0 0
    %466 = vmatpush1.bf16.msra.mxu0 %v364
    %467 = vmatprep.subr.bf16.mxu0 0
    %468 = vmatpush1.bf16.msra.mxu0 %v365
    %469 = vmatprep.subr.bf16.mxu0 0
    %470 = vmatpush1.bf16.msra.mxu0 %v366
    %471 = vmatprep.subr.bf16.mxu0 0
    %472 = vmatpush1.bf16.msra.mxu0 %v367
    %473 = vmatprep.subr.bf16.mxu0 0
    %474 = vmatpush1.bf16.msra.mxu0 %v368
    %475 = vmatprep.subr.bf16.mxu0 0
    %476 = vmatpush1.bf16.msra.mxu0 %v369
    %477 = vmatprep.subr.bf16.mxu0 0
    %478 = vmatpush1.bf16.msra.mxu0 %v370
    %479 = vmatprep.subr.bf16.mxu0 0
    %480 = vmatpush1.bf16.msra.mxu0 %v371
    %481 = vmatprep.subr.bf16.mxu0 0
    %482 = vmatpush1.bf16.msra.mxu0 %v372
    %483 = vmatprep.subr.bf16.mxu0 0
    %484 = vmatpush1.bf16.msra.mxu0 %v373
    %485 = vmatprep.subr.bf16.mxu0 0
    %486 = vmatpush1.bf16.msra.mxu0 %v374
    %487 = vmatprep.subr.bf16.mxu0 0
    %488 = vmatpush1.bf16.msra.mxu0 %v375
    %489 = vmatprep.subr.bf16.mxu0 0
    %490 = vmatpush1.bf16.msra.mxu0 %v417
    %491 = vmatprep.mubr.bf16.mxu0 %v410
    %492 = vmatmul.mubr.bf16.gmra.mrb[0].mxu0 %v212
    %v493 = vpop.f32.mrb[0].mxu0
    %v494 = vadd.f32 %v454, %v493
    %v495 = vpop.f32.mrb[0].mxu0
    %v496 = vpop.f32.mrb[0].mxu0
    %v497 = vpop.f32.mrb[0].mxu0
    %498 = vdwg.mxu0
    %vm499 = vcmp.gt.f32.partialorder %v494, 0.0
    %v500 = vmul.f32 %v494, 0.2
    %v501 = vsel %vm499, %v494, %v500
    %v502 = vpack.c.bf16 %v501, %v501
    %v503 = vld [vmem:[#allocation7 + $0x1] sm:$0x1]
    %v504 = vlaneseq
    %v505 = vshrl.u32 %v504, 7
    %v506 = vsub.s32 0, %v505
    %v507 = vrot.slane %v503, %v506
    %v524 = vunpack.c.l.b16 %v123
    %v525 = vunpack.c.l.b16 %v124
    %v526 = vunpack.c.l.b16 %v125
    %v527 = vunpack.c.l.b16 %v126
    %v528 = vunpack.c.l.b16 %v127
    %v529 = vunpack.c.l.b16 %v128
    %v530 = vunpack.c.l.b16 %v129
    %v531 = vunpack.c.l.b16 %v130
    %v532 = vunpack.c.l.b16 %v131
    %v533 = vunpack.c.l.b16 %v132
    %v534 = vunpack.c.l.b16 %v133
    %v535 = vunpack.c.l.b16 %v134
    %v536 = vunpack.c.l.b16 %v135
    %v537 = vunpack.c.l.b16 %v136
    %v538 = vunpack.c.l.b16 %v137
    %v539 = vunpack.c.l.b16 %v138
    %v540 = vpack.c.b16 %v525, %v524
    %v541 = vpack.c.b16 %v527, %v526
    %v542 = vpack.c.b16 %v529, %v528
    %v543 = vpack.c.b16 %v531, %v530
    %v544 = vpack.c.b16 %v533, %v532
    %v545 = vpack.c.b16 %v535, %v534
    %v546 = vpack.c.b16 %v537, %v536
    %v547 = vpack.c.b16 %v539, %v538
    %556 = vmatprep.subr.bf16.mxu0 0
    %557 = vmatpush1.bf16.msra.mxu0 %v540
    %558 = vmatprep.subr.bf16.mxu0 0
    %559 = vmatpush1.bf16.msra.mxu0 %v541
    %560 = vmatprep.subr.bf16.mxu0 0
    %561 = vmatpush1.bf16.msra.mxu0 %v542
    %562 = vmatprep.subr.bf16.mxu0 0
    %563 = vmatpush1.bf16.msra.mxu0 %v543
    %564 = vmatprep.subr.bf16.mxu0 0
    %565 = vmatpush1.bf16.msra.mxu0 %v544
    %566 = vmatprep.subr.bf16.mxu0 0
    %567 = vmatpush1.bf16.msra.mxu0 %v545
    %568 = vmatprep.subr.bf16.mxu0 0
    %569 = vmatpush1.bf16.msra.mxu0 %v546
    %570 = vmatprep.subr.bf16.mxu0 0
    %571 = vmatpush1.bf16.msra.mxu0 %v547
    %572 = vmatprep.subr.bf16.mxu0 0
    %573 = vmatpush1.bf16.msra.mxu0 0
    %574 = vmatprep.subr.bf16.mxu0 0
    %575 = vmatpush1.bf16.msra.mxu0 0
    %576 = vmatprep.subr.bf16.mxu0 0
    %577 = vmatpush1.bf16.msra.mxu0 0
    %578 = vmatprep.subr.bf16.mxu0 0
    %579 = vmatpush1.bf16.msra.mxu0 0
    %580 = vmatprep.subr.bf16.mxu0 0
    %581 = vmatpush1.bf16.msra.mxu0 0
    %582 = vmatprep.subr.bf16.mxu0 0
    %583 = vmatpush1.bf16.msra.mxu0 0
    %584 = vmatprep.subr.bf16.mxu0 0
    %585 = vmatpush1.bf16.msra.mxu0 0
    %586 = vmatprep.subr.bf16.mxu0 0
    %587 = vmatpush1.bf16.msra.mxu0 0
    %588 = vmatprep.mubr.bf16.mxu0 0
    %589 = vmatmul.mubr.bf16.gmra.mrb[0].mxu0 %v502
    %v590 = vpop.f32.mrb[0].mxu0
    %v591 = vadd.f32 %v507, %v590
    %v592 = vpop.f32.mrb[0].mxu0
    %v593 = vpop.f32.mrb[0].mxu0
    %v594 = vpop.f32.mrb[0].mxu0
    %595 = vdwg.mxu0
    %vm596 = vcmp.gt.f32.partialorder %v591, 0.0
    %v597 = vmul.f32 %v591, 0.2
    %v598 = vsel %vm596, %v591, %v597
    %v599 = vpack.c.bf16 %v598, %v598
    %v600 = vld [vmem:[#allocation7 + $0x2] sm:$0x1]
    %v601 = vlaneseq
    %v602 = vshrl.u32 %v601, 7
    %v603 = vsub.s32 0, %v602
    %v604 = vrot.slane %v600, %v603
    %v621 = vunpack.c.l.b16 %v139
    %v622 = vunpack.c.l.b16 %v140
    %v623 = vunpack.c.l.b16 %v141
    %v624 = vunpack.c.l.b16 %v142
    %v625 = vunpack.c.l.b16 %v143
    %v626 = vunpack.c.l.b16 %v144
    %v627 = vunpack.c.l.b16 %v145
    %v628 = vunpack.c.l.b16 %v146
    %v629 = vunpack.c.l.b16 %v147
    %v630 = vunpack.c.l.b16 %v148
    %v631 = vunpack.c.l.b16 %v149
    %v632 = vunpack.c.l.b16 %v150
    %v633 = vunpack.c.l.b16 %v151
    %v634 = vunpack.c.l.b16 %v152
    %v635 = vunpack.c.l.b16 %v153
    %v636 = vunpack.c.l.b16 %v154
    %v637 = vpack.c.b16 %v622, %v621
    %v638 = vpack.c.b16 %v624, %v623
    %v639 = vpack.c.b16 %v626, %v625
    %v640 = vpack.c.b16 %v628, %v627
    %v641 = vpack.c.b16 %v630, %v629
    %v642 = vpack.c.b16 %v632, %v631
    %v643 = vpack.c.b16 %v634, %v633
    %v644 = vpack.c.b16 %v636, %v635
    %653 = vmatprep.subr.bf16.mxu0 0
    %654 = vmatpush1.bf16.msra.mxu0 %v637
    %655 = vmatprep.subr.bf16.mxu0 0
    %656 = vmatpush1.bf16.msra.mxu0 %v638
    %657 = vmatprep.subr.bf16.mxu0 0
    %658 = vmatpush1.bf16.msra.mxu0 %v639
    %659 = vmatprep.subr.bf16.mxu0 0
    %660 = vmatpush1.bf16.msra.mxu0 %v640
    %661 = vmatprep.subr.bf16.mxu0 0
    %662 = vmatpush1.bf16.msra.mxu0 %v641
    %663 = vmatprep.subr.bf16.mxu0 0
    %664 = vmatpush1.bf16.msra.mxu0 %v642
    %665 = vmatprep.subr.bf16.mxu0 0
    %666 = vmatpush1.bf16.msra.mxu0 %v643
    %667 = vmatprep.subr.bf16.mxu0 0
    %668 = vmatpush1.bf16.msra.mxu0 %v644
    %669 = vmatprep.subr.bf16.mxu0 0
    %670 = vmatpush1.bf16.msra.mxu0 0
    %671 = vmatprep.subr.bf16.mxu0 0
    %672 = vmatpush1.bf16.msra.mxu0 0
    %673 = vmatprep.subr.bf16.mxu0 0
    %674 = vmatpush1.bf16.msra.mxu0 0
    %675 = vmatprep.subr.bf16.mxu0 0
    %676 = vmatpush1.bf16.msra.mxu0 0
    %677 = vmatprep.subr.bf16.mxu0 0
    %678 = vmatpush1.bf16.msra.mxu0 0
    %679 = vmatprep.subr.bf16.mxu0 0
    %680 = vmatpush1.bf16.msra.mxu0 0
    %681 = vmatprep.subr.bf16.mxu0 0
    %682 = vmatpush1.bf16.msra.mxu0 0
    %683 = vmatprep.subr.bf16.mxu0 0
    %684 = vmatpush1.bf16.msra.mxu0 0
    %685 = vmatprep.mubr.bf16.mxu0 0
    %686 = vmatmul.mubr.bf16.gmra.mrb[0].mxu0 %v599
    %v687 = vpop.f32.mrb[0].mxu0
    %v688 = vadd.f32 %v604, %v687
    %v689 = vpop.f32.mrb[0].mxu0
    %v690 = vpop.f32.mrb[0].mxu0
    %v691 = vpop.f32.mrb[0].mxu0
    %692 = vdwg.mxu0
    %vm693 = vcmp.gt.f32.partialorder %v688, 0.0
    %v694 = vmul.f32 %v688, 0.2
    %v695 = vsel %vm693, %v688, %v694
    %v696 = vpack.c.bf16 %v695, %v695
    %v697 = vld [vmem:[#allocation7 + $0x3] sm:$0x1]
    %v698 = vlaneseq
    %v699 = vshrl.u32 %v698, 7
    %v700 = vsub.s32 0, %v699
    %v701 = vrot.slane %v697, %v700
    %v718 = vunpack.c.l.b16 %v155
    %v719 = vunpack.c.l.b16 %v156
    %v720 = vunpack.c.l.b16 %v157
    %v721 = vunpack.c.l.b16 %v158
    %v722 = vunpack.c.l.b16 %v159
    %v723 = vunpack.c.l.b16 %v160
    %v724 = vunpack.c.l.b16 %v161
    %v725 = vunpack.c.l.b16 %v162
    %v726 = vunpack.c.l.b16 %v163
    %v727 = vunpack.c.l.b16 %v164
    %v728 = vunpack.c.l.b16 %v165
    %v729 = vunpack.c.l.b16 %v166
    %v730 = vunpack.c.l.b16 %v167
    %v731 = vunpack.c.l.b16 %v168
    %v732 = vunpack.c.l.b16 %v169
    %v733 = vunpack.c.l.b16 %v170
    %v734 = vpack.c.b16 %v719, %v718
    %v735 = vpack.c.b16 %v721, %v720
    %v736 = vpack.c.b16 %v723, %v722
    %v737 = vpack.c.b16 %v725, %v724
    %v738 = vpack.c.b16 %v727, %v726
    %v739 = vpack.c.b16 %v729, %v728
    %v740 = vpack.c.b16 %v731, %v730
    %v741 = vpack.c.b16 %v733, %v732
    %750 = vmatprep.subr.bf16.mxu0 0
    %751 = vmatpush1.bf16.msra.mxu0 %v734
    %752 = vmatprep.subr.bf16.mxu0 0
    %753 = vmatpush1.bf16.msra.mxu0 %v735
    %754 = vmatprep.subr.bf16.mxu0 0
    %755 = vmatpush1.bf16.msra.mxu0 %v736
    %756 = vmatprep.subr.bf16.mxu0 0
    %757 = vmatpush1.bf16.msra.mxu0 %v737
    %758 = vmatprep.subr.bf16.mxu0 0
    %759 = vmatpush1.bf16.msra.mxu0 %v738
    %760 = vmatprep.subr.bf16.mxu0 0
    %761 = vmatpush1.bf16.msra.mxu0 %v739
    %762 = vmatprep.subr.bf16.mxu0 0
    %763 = vmatpush1.bf16.msra.mxu0 %v740
    %764 = vmatprep.subr.bf16.mxu0 0
    %765 = vmatpush1.bf16.msra.mxu0 %v741
    %766 = vmatprep.subr.bf16.mxu0 0
    %767 = vmatpush1.bf16.msra.mxu0 0
    %768 = vmatprep.subr.bf16.mxu0 0
    %769 = vmatpush1.bf16.msra.mxu0 0
    %770 = vmatprep.subr.bf16.mxu0 0
    %771 = vmatpush1.bf16.msra.mxu0 0
    %772 = vmatprep.subr.bf16.mxu0 0
    %773 = vmatpush1.bf16.msra.mxu0 0
    %774 = vmatprep.subr.bf16.mxu0 0
    %775 = vmatpush1.bf16.msra.mxu0 0
    %776 = vmatprep.subr.bf16.mxu0 0
    %777 = vmatpush1.bf16.msra.mxu0 0
    %778 = vmatprep.subr.bf16.mxu0 0
    %779 = vmatpush1.bf16.msra.mxu0 0
    %780 = vmatprep.subr.bf16.mxu0 0
    %781 = vmatpush1.bf16.msra.mxu0 0
    %782 = vmatprep.mubr.bf16.mxu0 0
    %783 = vmatmul.mubr.bf16.gmra.mrb[0].mxu0 %v696
    %v784 = vpop.f32.mrb[0].mxu0
    %v785 = vadd.f32 %v701, %v784
    %v786 = vpop.f32.mrb[0].mxu0
    %v787 = vpop.f32.mrb[0].mxu0
    %v788 = vpop.f32.mrb[0].mxu0
    %789 = vdwg.mxu0
    %790 = vst [vmem:[#allocation8] sm:$0xff] %v785
    // Predicated region
    $region26: #{tpu_custom_call.1} parent=1 // pred_check
      _
    $region27: #{tpu_custom_call.1} parent=1 // pred_check_branch
      %792 = sbr.rel (0) target = $region29
    $region28: #{tpu_custom_call.1} parent=1 // pred_region
      %s794 = ssub.s32 128, 32
      %795 = vsyncadd [#allocation4], %s794
      %s796 = sshll.u32 [#allocation8], 4
      %s797 = int_to_ptr.vmem [resolvable:$true] %s796
      %802 = dma.vmem_to_hbm [thread:$0]  %s797, 32, %s3, [#allocation4], 32, 32, 2
    $region29: #{tpu_custom_call.1} parent=1 // pred_fallthru
      _
    // Predicated region
    $region30: #{tpu_custom_call.1} parent=1 // pred_check
      _
    $region31: #{tpu_custom_call.1} parent=1 // pred_check_branch
      %804 = sbr.rel (0) target = $region33
    $region32: #{tpu_custom_call.1} parent=1 // pred_region
      %805 = dma.done [#allocation4], 128
    $region33: #{tpu_custom_call.1} parent=1 // pred_fallthru
      _
    %806 = vsyncpa [#allocation3], 1
    %807 = vsyncpa [#allocation6], 1
    %808 = vsyncpa [#allocation4], 1

</llo_original>
